<compile_context>
chip_gen: v7x
topology: tpu7x:2x2x1
jax: 0.10.0
libtpu: 0.0.40
codegen_flags: <defaults>
</compile_context>

<pallas_src>
import functools

import jax
import jax.numpy as jnp
from jax.experimental import pallas as pl
from jax.experimental.pallas import tpu as pltpu


def _round_up(a: int, b: int) -> int:
    return (a + b - 1) // b * b


def _mtlr_kernel(x_ref, w_ref, b_ref, o_ref, acc_ref):
    """Computes one (block_m, n_pad) output tile, reduced over the K grid axis."""
    kk = pl.program_id(1)

    @pl.when(kk == 0)
    def _init():
        acc_ref[...] = jnp.zeros_like(acc_ref)

    # MXU matmul with f32 accumulation.
    acc_ref[...] += jnp.dot(
        x_ref[...], w_ref[...], preferred_element_type=jnp.float32
    )

    @pl.when(kk == pl.num_programs(1) - 1)
    def _finalize():
        # Bias add in f32, broadcast (1, n_pad) over the batch tile.
        o_ref[...] = (acc_ref[...] + b_ref[...]).astype(o_ref.dtype)


@functools.partial(
    jax.jit,
    static_argnames=("block_m", "block_k", "force_pallas", "compute_in_bf16"),
)
def mtlr_forward(
    x,
    weight,
    bias,
    *,
    block_m=512,
    block_k=1024,
    force_pallas=False,
    compute_in_bf16=False,
):
    """y = x @ weight + bias  (MTLRLayer.forward)."""
    m, k = x.shape
    k2, n = weight.shape
    assert k == k2, "in_features mismatch"
    out_dtype = x.dtype

    # Tiny problems: custom-call + per-step overhead dominates; let XLA fuse it.
    if not force_pallas and (m * k * n) < (1 << 20):
        return (
            jnp.matmul(x, weight, precision=jax.lax.Precision.HIGHEST)
            + bias[None, :]
        )

    # ---- tile selection: (8,128)-aligned, VMEM-friendly ---------------------
    n_pad = _round_up(n, 128)                       # lane-dense output
    bm = max(8, min(_round_up(block_m, 8), _round_up(m, 8)))
    m_pad = _round_up(m, bm)                        # handles ragged batch
    if k <= block_k:
        bk = k                                      # full K resident in VMEM
    else:
        bk = _round_up(block_k, 128)                # tile the reduction axis
    k_pad = _round_up(k, bk)

    # Zero-padding is exact for the matmul; pad rows/cols are sliced off below.
    x_p = x
    if m_pad != m or k_pad != k:
        x_p = jnp.pad(x, ((0, m_pad - m), (0, k_pad - k)))
    w_p = weight
    if k_pad != k or n_pad != n:
        w_p = jnp.pad(weight, ((0, k_pad - k), (0, n_pad - n)))
    b_p = bias if n_pad == n else jnp.pad(bias, (0, n_pad - n))
    b_p = b_p.reshape(1, n_pad)

    if compute_in_bf16:
        # Numerics tradeoff: bf16 inputs, f32 accumulation (v6e/v7x MXU peak).
        x_p = x_p.astype(jnp.bfloat16)
        w_p = w_p.astype(jnp.bfloat16)

    grid = (m_pad // bm, k_pad // bk)               # K (reduction) axis last

    # VMEM budget: double-buffered x / w / out tiles + f32 accumulator + slack.
    vmem_bytes = 4 * (2 * bm * bk + 2 * bk * n_pad + 2 * bm * n_pad + bm * n_pad)
    vmem_limit = int(min(max(vmem_bytes + (2 << 20), 16 << 20), 64 << 20))

    cost = pl.CostEstimate(
        flops=2 * m * k * n,
        transcendentals=0,
        bytes_accessed=4 * (m * k + k * n + m * n),
    )

    out = pl.pallas_call(
        _mtlr_kernel,
        out_shape=jax.ShapeDtypeStruct((m_pad, n_pad), out_dtype),
        grid_spec=pltpu.PrefetchScalarGridSpec(
            num_scalar_prefetch=0,
            grid=grid,
            in_specs=[
                # x: tile over batch and K.
                pl.BlockSpec((bm, bk), lambda i, kk: (i, kk)),
                # weight: K-tile, full (padded) N.
                pl.BlockSpec((bk, n_pad), lambda i, kk: (kk, 0)),
                # bias: single padded row, broadcast over the batch tile.
                pl.BlockSpec((1, n_pad), lambda i, kk: (0, 0)),
            ],
            out_specs=pl.BlockSpec((bm, n_pad), lambda i, kk: (i, 0)),
            scratch_shapes=[pltpu.VMEM((bm, n_pad), jnp.float32)],
        ),
        compiler_params=pltpu.CompilerParams(
            dimension_semantics=("parallel", "arbitrary"),
            vmem_limit_bytes=vmem_limit,
        ),
        cost_estimate=cost,
    )(x_p, w_p, b_p)

    return out[:m, :n]


def init_mtlr_params(key, in_features, num_time_bins, dtype=jnp.float32):
    """Deterministic init matching MTLRLayer.reset_parameters semantics.

    Weight: kaiming_normal_ (fan_in mode, gain=sqrt(2); for a 2-D tensor
    PyTorch's fan_in = weight.shape[1] = num_time_bins - 1).
    Bias: zeros.
    """
    out_dim = num_time_bins - 1
    fan_in = out_dim
    std = (2.0 / fan_in) ** 0.5
    weight = std * jax.random.normal(key, (in_features, out_dim), dtype=dtype)
    bias = jnp.zeros((out_dim,), dtype=dtype)
    return weight, bias


if __name__ == "__main__":
    key = jax.random.PRNGKey(0)
    kx, kw, kx2, kw2 = jax.random.split(key, 4)

    # ---- small shapes consistent with the module ----------------------------
    batch, in_features, num_time_bins = 8, 32, 9  # out_dim = 8
    x = jax.random.normal(kx, (batch, in_features), dtype=jnp.float32)
    weight, bias = init_mtlr_params(kw, in_features, num_time_bins)

    y = jax.block_until_ready(mtlr_forward(x, weight, bias, force_pallas=True))
    y_ref = jnp.matmul(x, weight, precision=jax.lax.Precision.HIGHEST) + bias
    assert y.shape == (batch, num_time_bins - 1)
    assert jnp.allclose(y, y_ref, atol=1e-4, rtol=1e-4)

    # ---- exercise the tiled path: ragged batch + K-tiling -------------------
    batch2, in2, bins2 = 260, 384, 25
    x2 = jax.random.normal(kx2, (batch2, in2), dtype=jnp.float32)
    w2, b2 = init_mtlr_params(kw2, in2, bins2)
    y2 = jax.block_until_ready(
        mtlr_forward(x2, w2, b2, block_m=128, block_k=128, force_pallas=True)
    )
    y2_ref = jnp.matmul(x2, w2, precision=jax.lax.Precision.HIGHEST) + b2
    assert y2.shape == (batch2, bins2 - 1)
    assert jnp.allclose(y2, y2_ref, atol=1e-4, rtol=1e-4)

    # ---- optional bf16-input path (looser tolerance: numerics tradeoff) -----
    y2_bf16 = jax.block_until_ready(
        mtlr_forward(
            x2, w2, b2, block_m=128, block_k=128,
            force_pallas=True, compute_in_bf16=True,
        )
    )
    assert jnp.allclose(y2_bf16, y2_ref, atol=1e-1, rtol=1e-1)

    # ---- tiny-shape fallback (plain XLA dot) matches too ---------------------
    y3 = jax.block_until_ready(mtlr_forward(x, weight, bias))
    assert jnp.allclose(y3, y_ref, atol=1e-5, rtol=1e-5)

    print("KERNEL_OK")
</pallas_src>

<mosaic_0001>
module attributes {stable_mosaic.version = 11 : i64} {
  func.func @_mtlr_kernel(%arg0: i32, %arg1: i32, %arg2: memref<8x32xf32, #tpu.memory_space<vmem>>, %arg3: memref<32x128xf32, #tpu.memory_space<vmem>>, %arg4: memref<1x128xf32, #tpu.memory_space<vmem>>, %arg5: memref<8x128xf32, #tpu.memory_space<vmem>>, %arg6: memref<8x128xf32, #tpu.memory_space<vmem>>) attributes {dimension_semantics = [#tpu.dimension_semantics<parallel>, #tpu.dimension_semantics<arbitrary>], iteration_bounds = array<i64: 1, 1>, scalar_prefetch = 0 : i64, scratch_operands = 1 : i64, tpu.core_type = #tpu.core_type<tc>, window_params = [{transform_indices = @transform_0, window_bounds = array<i64: 8, 32>}, {transform_indices = @transform_1, window_bounds = array<i64: 32, 128>}, {pipeline_mode = #tpu.pipeline_mode<synchronous>, transform_indices = @transform_2, window_bounds = array<i64: 1, 128>}, {transform_indices = @transform_3, window_bounds = array<i64: 8, 128>}]} {
    %c0_i32 = arith.constant 0 : i32
    %0 = arith.cmpi eq, %arg1, %c0_i32 : i32
    %1 = arith.extui %0 : i1 to i32
    %c0_i32_0 = arith.constant 0 : i32
    %2 = arith.cmpi ne, %1, %c0_i32_0 : i32
    scf.if %2 {
      %cst_10 = arith.constant 0.000000e+00 : f32
      %12 = vector.broadcast %cst_10 : f32 to vector<8x128xf32>
      %c0_11 = arith.constant 0 : index
      %c0_12 = arith.constant 0 : index
      %13 = vector.load %arg6[%c0_11, %c0_12] : memref<8x128xf32, #tpu.memory_space<vmem>>, vector<8x128xf32>
      tpu.vector_store %arg6[%c0_11, %c0_12], %12 {strides = array<i32>} : memref<8x128xf32, #tpu.memory_space<vmem>>, vector<8x128xf32>,
    } else {
    }
    %c0 = arith.constant 0 : index
    %c0_1 = arith.constant 0 : index
    %3 = vector.load %arg6[%c0, %c0_1] : memref<8x128xf32, #tpu.memory_space<vmem>>, vector<8x128xf32>
    %c0_2 = arith.constant 0 : index
    %c0_3 = arith.constant 0 : index
    %4 = vector.load %arg2[%c0_2, %c0_3] : memref<8x32xf32, #tpu.memory_space<vmem>>, vector<8x32xf32>
    %c0_4 = arith.constant 0 : index
    %c0_5 = arith.constant 0 : index
    %5 = vector.load %arg3[%c0_4, %c0_5] : memref<32x128xf32, #tpu.memory_space<vmem>>, vector<32x128xf32>
    %cst = arith.constant dense<0.000000e+00> : vector<8x128xf32>
    %6 = tpu.matmul %4, %5, %cst {dimension_numbers = #tpu.dot_dimension_numbers<[1], [0], [0], [1], [0, 0, 1, 1], [], []>} : vector<8x32xf32>, vector<32x128xf32>, vector<8x128xf32> -> vector<8x128xf32>
    %7 = arith.addf %3, %6 : vector<8x128xf32>
    %c0_6 = arith.constant 0 : index
    %c0_7 = arith.constant 0 : index
    %8 = vector.load %arg6[%c0_6, %c0_7] : memref<8x128xf32, #tpu.memory_space<vmem>>, vector<8x128xf32>
    tpu.vector_store %arg6[%c0_6, %c0_7], %7 {strides = array<i32>} : memref<8x128xf32, #tpu.memory_space<vmem>>, vector<8x128xf32>,
    %c0_i32_8 = arith.constant 0 : i32
    %9 = arith.cmpi eq, %arg1, %c0_i32_8 : i32
    %10 = arith.extui %9 : i1 to i32
    %c0_i32_9 = arith.constant 0 : i32
    %11 = arith.cmpi ne, %10, %c0_i32_9 : i32
    scf.if %11 {
      %c0_10 = arith.constant 0 : index
      %c0_11 = arith.constant 0 : index
      %12 = vector.load %arg6[%c0_10, %c0_11] : memref<8x128xf32, #tpu.memory_space<vmem>>, vector<8x128xf32>
      %c0_12 = arith.constant 0 : index
      %c0_13 = arith.constant 0 : index
      %13 = vector.load %arg4[%c0_12, %c0_13] : memref<1x128xf32, #tpu.memory_space<vmem>>, vector<1x128xf32>
      %14 = vector.broadcast %13 : vector<1x128xf32> to vector<8x128xf32>
      %15 = arith.addf %12, %14 : vector<8x128xf32>
      %c0_14 = arith.constant 0 : index
      %c0_15 = arith.constant 0 : index
      %16 = vector.load %arg5[%c0_14, %c0_15] : memref<8x128xf32, #tpu.memory_space<vmem>>, vector<8x128xf32>
      tpu.vector_store %arg5[%c0_14, %c0_15], %15 {strides = array<i32>} : memref<8x128xf32, #tpu.memory_space<vmem>>, vector<8x128xf32>,
    } else {
    }
    return
  }
  func.func @transform_0(%arg0: i32, %arg1: i32) -> (i32, i32) {
    %c0_i32 = arith.constant 0 : i32
    return %arg0, %arg1 : i32, i32
  }
  func.func @transform_1(%arg0: i32, %arg1: i32) -> (i32, i32) {
    %c0_i32 = arith.constant 0 : i32
    %c0_i32_0 = arith.constant 0 : i32
    return %arg1, %c0_i32 : i32, i32
  }
  func.func @transform_2(%arg0: i32, %arg1: i32) -> (i32, i32) {
    %c0_i32 = arith.constant 0 : i32
    %c0_i32_0 = arith.constant 0 : i32
    %c0_i32_1 = arith.constant 0 : i32
    return %c0_i32, %c0_i32_0 : i32, i32
  }
  func.func @transform_3(%arg0: i32, %arg1: i32) -> (i32, i32) {
    %c0_i32 = arith.constant 0 : i32
    %c0_i32_0 = arith.constant 0 : i32
    return %arg0, %c0_i32 : i32, i32
  }
}

</mosaic_0001>

<llo_original>
// kernel: mtlr_forward.1
$region0: #{mtlr_forward.1}
  #allocation0 [shape = 'u32[]', space=smem, size = 0x4, offset = 0x4, fixed_abs, tag = 'smem constant byte address 0x4 - core index']
  #allocation1 [shape = 'u32[144,128]{1,0:T(1,128)}', space=vmem, size = 0x12000, scoped, tag = 'internal scratch']
  #allocation2 [shape = 'f32[8,128]{1,0:T(8,128)}', space=vmem, size = 0x1000, scoped, tag = 'scratch operand']
  %s0 = inlined_call_operand.vmem [shape: f32[8,32], index: 0, kind: input, shape index: {}]
  %s1 = inlined_call_operand.vmem [shape: f32[32,128], index: 1, kind: input, shape index: {}]
  %s2 = inlined_call_operand.vmem [shape: f32[1,128], index: 2, kind: input, shape index: {}]
  %s3 = inlined_call_operand.hbm [shape: f32[8,128], index: 3, kind: output, shape index: {}]
  %s4 = sld [smem:[#allocation0]]
  $region30: #{mtlr_forward.1} parent=0
    _
  %s6 = ssub.s32 1, %s4
  %s7 = scalar_select 0, %s6, %s4
  $region1: #{mtlr_forward.1} parent=0
    #allocation3 [shape = 'u8[4096]{0}', space=vmem, size = 0x1000, scoped, tag = 'output window, operand 0, single buffered']
    #allocation4 [shape = 's32[1]{0}', space=sflag, size = 0x4, scoped, tag = 'scoped memory for mtlr_forward.1']
    %8 = vsyncpa [#allocation4], 0
    // Predicated region
    $region2: #{mtlr_forward.1} parent=1 // pred_check
      _
    $region3: #{mtlr_forward.1} parent=1 // pred_check_branch
      %10 = sbr.rel (0) target = $region5
    $region4: #{mtlr_forward.1} parent=1 // pred_region
      _
    $region5: #{mtlr_forward.1} parent=1 // pred_fallthru
      _
    // Predicated region
    $region6: #{mtlr_forward.1} parent=1 // pred_check
      _
    $region7: #{mtlr_forward.1} parent=1 // pred_check_branch
      %12 = sbr.rel (0) target = $region9
    $region8: #{mtlr_forward.1} parent=1 // pred_region
      _
    $region9: #{mtlr_forward.1} parent=1 // pred_fallthru
      _
    // Predicated region
    $region10: #{mtlr_forward.1} parent=1 // pred_check
      _
    $region11: #{mtlr_forward.1} parent=1 // pred_check_branch
      %14 = sbr.rel (0) target = $region13
    $region12: #{mtlr_forward.1} parent=1 // pred_region
      _
    $region13: #{mtlr_forward.1} parent=1 // pred_fallthru
      _
    %p15 = scmp.eq.s32.totalorder 0, 0
    // Predicated region
    $region14: #{mtlr_forward.1} parent=1 // pred_check
      %p16 = pneg %p15
    $region15: #{mtlr_forward.1} parent=1 // pred_check_branch
      %18 = sbr.rel (%p16) target = $region17
    $region16: #{mtlr_forward.1} parent=1 // pred_region
      %19 = vst [vmem:[#allocation2] sm:$0xff] 0.0
    $region17: #{mtlr_forward.1} parent=1 // pred_fallthru
      _
    %v20 = vld [vmem:[#allocation2] sm:$0xff]
    %v21 = vld [vmem:[%s0] sm:$0xff]
    %v22 = vld [vmem:[%s1] sm:$0xff]
    %v23 = vld [vmem:[%s1 + $0x8] sm:$0xff]
    %v24 = vld [vmem:[%s1 + $0x10] sm:$0xff]
    %v25 = vld [vmem:[%s1 + $0x18] sm:$0xff]
    %vm26 = vcmask 261120
    %v28 = vsel %vm26, %v21, 0
    %30 = vmatprep.subr.mxu0 0.0
    %31 = vmatpush1.msra.mxu0 %v22
    %32 = vmatprep.subr.mxu0 0.0
    %33 = vmatpush1.msra.mxu0 %v23
    %34 = vmatprep.subr.mxu0 0.0
    %35 = vmatpush1.msra.mxu0 %v24
    %36 = vmatprep.subr.mxu0 0.0
    %37 = vmatpush1.msra.mxu0 %v25
    %38 = vmatprep.subr.mxu0 0.0
    %39 = vmatpush1.msra.mxu0 0.0
    %40 = vmatprep.subr.mxu0 0.0
    %41 = vmatpush1.msra.mxu0 0.0
    %42 = vmatprep.subr.mxu0 0.0
    %43 = vmatpush1.msra.mxu0 0.0
    %44 = vmatprep.subr.mxu0 0.0
    %45 = vmatpush1.msra.mxu0 0.0
    %46 = vmatprep.subr.mxu0 0.0
    %47 = vmatpush1.msra.mxu0 0.0
    %48 = vmatprep.subr.mxu0 0.0
    %49 = vmatpush1.msra.mxu0 0.0
    %50 = vmatprep.subr.mxu0 0.0
    %51 = vmatpush1.msra.mxu0 0.0
    %52 = vmatprep.subr.mxu0 0.0
    %53 = vmatpush1.msra.mxu0 0.0
    %54 = vmatprep.subr.mxu0 0.0
    %55 = vmatpush1.msra.mxu0 0.0
    %56 = vmatprep.subr.mxu0 0.0
    %57 = vmatpush1.msra.mxu0 0.0
    %58 = vmatprep.subr.mxu0 0.0
    %59 = vmatpush1.msra.mxu0 0.0
    %60 = vmatprep.subr.mxu0 0.0
    %61 = vmatpush1.msra.mxu0 0.0
    %62 = vmatprep.subr.mxu0 0.0
    %63 = vmatpush1.msra.mxu0 0.0
    %64 = vmatprep.subr.mxu0 0.0
    %65 = vmatpush1.msra.mxu0 0.0
    %66 = vmatprep.subr.mxu0 0.0
    %67 = vmatpush1.msra.mxu0 0.0
    %68 = vmatprep.subr.mxu0 0.0
    %69 = vmatpush1.msra.mxu0 0.0
    %70 = vmatprep.subr.mxu0 0.0
    %71 = vmatpush1.msra.mxu0 0.0
    %72 = vmatprep.subr.mxu0 0.0
    %73 = vmatpush1.msra.mxu0 0.0
    %74 = vmatprep.subr.mxu0 0.0
    %75 = vmatpush1.msra.mxu0 0.0
    %76 = vmatprep.subr.mxu0 0.0
    %77 = vmatpush1.msra.mxu0 0.0
    %78 = vmatprep.subr.mxu0 0.0
    %79 = vmatpush1.msra.mxu0 0.0
    %80 = vmatprep.subr.mxu0 0.0
    %81 = vmatpush1.msra.mxu0 0.0
    %82 = vmatprep.subr.mxu0 0.0
    %83 = vmatpush1.msra.mxu0 0.0
    %84 = vmatprep.subr.mxu0 0.0
    %85 = vmatpush1.msra.mxu0 0.0
    %86 = vmatprep.subr.mxu0 0.0
    %87 = vmatpush1.msra.mxu0 0.0
    %88 = vmatprep.subr.mxu0 0.0
    %89 = vmatpush1.msra.mxu0 0.0
    %90 = vmatprep.subr.mxu0 0.0
    %91 = vmatpush1.msra.mxu0 0.0
    %92 = vmatprep.subr.mxu0 0.0
    %93 = vmatpush1.msra.mxu0 0.0
    %94 = vmatprep.mubr.f32.mxu0 0.0
    %95 = vmatmul.mubr.f32.gmra.mrb[0].mxu0 %v28
    %v96 = vpop.f32.mrb[0].mxu0
    %v97 = vadd.f32 0.0, %v96
    %v98 = vpop.f32.mrb[0].mxu0
    %99 = vdwg.mxu0
    %v100 = vadd.f32 %v20, %v97
    %101 = vst [vmem:[#allocation2] sm:$0xff] %v100
    // Predicated region
    $region18: #{mtlr_forward.1} parent=1 // pred_check
      %p102 = pneg %p15
    $region19: #{mtlr_forward.1} parent=1 // pred_check_branch
      %104 = sbr.rel (%p102) target = $region21
    $region20: #{mtlr_forward.1} parent=1 // pred_region
      %v105 = vld [vmem:[#allocation2] sm:$0xff]
      %v106 = vld [vmem:[%s2] sm:$0x1]
      %v108 = vlaneseq
      %v109 = vshrl.u32 %v108, 7
      %v110 = vsub.s32 0, %v109
      %v111 = vrot.slane %v106, %v110
      %v113 = vadd.f32 %v105, %v111
      %114 = vst [vmem:[#allocation3] sm:$0xff] %v113
    $region21: #{mtlr_forward.1} parent=1 // pred_fallthru
      _
    // Predicated region
    $region22: #{mtlr_forward.1} parent=1 // pred_check
      _
    $region23: #{mtlr_forward.1} parent=1 // pred_check_branch
      %116 = sbr.rel (0) target = $region25
    $region24: #{mtlr_forward.1} parent=1 // pred_region
      %s118 = ssub.s32 128, 128
      %119 = vsyncadd [#allocation4], %s118
      %s121 = sshll.u32 [#allocation3], 4
      %s122 = int_to_ptr.vmem [resolvable:$true] %s121
      %124 = dma.vmem_to_hbm [thread:$0]  %s122, 128, %s3, [#allocation4]
    $region25: #{mtlr_forward.1} parent=1 // pred_fallthru
      _
    // Predicated region
    $region26: #{mtlr_forward.1} parent=1 // pred_check
      _
    $region27: #{mtlr_forward.1} parent=1 // pred_check_branch
      %126 = sbr.rel (0) target = $region29
    $region28: #{mtlr_forward.1} parent=1 // pred_region
      %127 = dma.done [#allocation4], 128
    $region29: #{mtlr_forward.1} parent=1 // pred_fallthru
      _
    %128 = vsyncpa [#allocation4], 1

</llo_original>
